<compile_context>
chip_gen: v5e
topology: v5e:2x2
jax: 0.10.0
libtpu: 0.0.40
codegen_flags: <defaults>
</compile_context>

<pallas_src>
import functools
import math

import jax
import jax.numpy as jnp
from jax.experimental import pallas as pl
from jax.experimental.pallas import tpu as pltpu


# ----------------------------- helpers -------------------------------------


def _squeeze_perm(shape, perm):
    """Drop size-1 axes from (shape, perm)."""
    keep = [a for a in range(len(shape)) if shape[a] != 1]
    new_idx = {a: i for i, a in enumerate(keep)}
    r_shape = tuple(shape[a] for a in keep)
    r_perm = tuple(new_idx[p] for p in perm if p in new_idx)
    return r_shape, r_perm


def _coalesce_perm(shape, perm):
    """Merge adjacent input axes that stay adjacent (in order) under `perm`."""
    if not perm:
        return tuple(shape), tuple(perm)
    groups = []  # runs of consecutive input axes, in OUTPUT order
    for p in perm:
        if groups and p == groups[-1][-1] + 1:
            groups[-1].append(p)
        else:
            groups.append([p])
    order = sorted(range(len(groups)), key=lambda g: groups[g][0])
    c_shape = tuple(math.prod(shape[a] for a in groups[g]) for g in order)
    group_to_axis = {g: i for i, g in enumerate(order)}
    c_perm = tuple(group_to_axis[g] for g in range(len(groups)))
    return c_shape, c_perm


def _floor_to(v, unit):
    return max(unit, (v // unit) * unit)


def _pick_tile(dim, unit, cap):
    """Tile = full dim, or a multiple of `unit` bounded by `cap`.

    Prefers a clean divisor of `dim` only if it is within ~2x of the cap;
    otherwise accepts the ragged cap-sized tile (one masked edge block per
    row instead of many tiny blocks + per-step overhead).
    """
    cap = max(unit, cap)
    if dim <= cap:
        return dim
    best = (cap // unit) * unit
    for t in range(best, max(unit, best // 2) - 1, -unit):
        if dim % t == 0:
            return t
    return best


@functools.lru_cache(maxsize=None)
def _einshape_ok():
    """One-time probe: does pltpu.einshape exist and permute as expected?"""
    if not hasattr(pltpu, "einshape"):
        return False
    try:
        def k2(x_ref, o_ref):
            o_ref[...] = pltpu.einshape("ab->ba", x_ref[...])

        x2 = jnp.arange(64 * 128, dtype=jnp.float32).reshape(64, 128)
        y2 = pl.pallas_call(
            k2, out_shape=jax.ShapeDtypeStruct((128, 64), jnp.float32))(x2)
        ok2 = bool(jnp.array_equal(y2, x2.T))

        def k3(x_ref, o_ref):
            o_ref[...] = pltpu.einshape("abc->bac", x_ref[...])

        x3 = jnp.arange(4 * 8 * 128, dtype=jnp.float32).reshape(4, 8, 128)
        y3 = pl.pallas_call(
            k3, out_shape=jax.ShapeDtypeStruct((8, 4, 128), jnp.float32))(x3)
        ok3 = bool(jnp.array_equal(y3, jnp.transpose(x3, (1, 0, 2))))
        return ok2 and ok3
    except Exception:
        return False


# ------------------------------ kernel ---------------------------------------


def _permute_kernel(x_ref, o_ref, *, in_active_shape, reduced_perm, use_einshape):
    # Squeeze unit block dims (layout-preserving, free), permute only the
    # active (tiled) dims, store a lane-dense output block.
    val = x_ref[...].reshape(in_active_shape)
    n = len(reduced_perm)
    if n > 1 and reduced_perm != tuple(range(n)):
        if use_einshape:
            letters = "abcdef"[:n]
            eq = letters + "->" + "".join(letters[p] for p in reduced_perm)
            val = pltpu.einshape(eq, val)
        else:
            val = jnp.transpose(val, reduced_perm)
    o_ref[...] = val.reshape(o_ref.shape)


# ----------------------------- wrapper --------------------------------------


def pallas_permute(x, from_dims: str, to_dims: str, *, interpret: bool = False):
    """Equivalent of Permute(from_dims, to_dims)(x) from the PyTorch module."""
    assert len(from_dims) == len(to_dims), (
        "Same number of from- and to- dimensions should be specified")
    if len(from_dims) not in {3, 4, 5, 6}:
        raise ValueError("Only 3, 4, 5, and 6D tensors supported in Permute for now")
    perm = tuple(from_dims.index(d) for d in to_dims)
    assert x.ndim == len(perm)
    out_shape = tuple(x.shape[p] for p in perm)

    # Fast path: identity permutation or empty tensor -> free reshape.
    if perm == tuple(range(x.ndim)) or x.size == 0:
        return x.reshape(out_shape)

    # Problem reduction (all free reshapes).
    r_shape, r_perm = _squeeze_perm(x.shape, perm)
    c_shape, c_perm = _coalesce_perm(r_shape, r_perm)
    cn = len(c_shape)
    if cn <= 1 or c_perm == tuple(range(cn)):
        # Only size-1 axes actually move: no data movement needed.
        return x.reshape(out_shape)

    xc = x.reshape(c_shape)
    c_out_shape = tuple(c_shape[p] for p in c_perm)

    itemsize = jnp.dtype(x.dtype).itemsize
    sub_unit = 8 * max(1, 4 // itemsize)       # 8 (f32), 16 (bf16), 32 (int8/fp8)
    lane_unit = 128

    lane_in, lane_out = cn - 1, c_perm[-1]     # input / output last axes
    sub_in, sub_out = cn - 2, c_perm[cn - 2]   # input / output 2nd-to-last axes

    # Units each axis must respect (lane role overrides sublane role).
    roles = {}
    for a, u in ((lane_in, lane_unit), (lane_out, lane_unit),
                 (sub_in, sub_unit), (sub_out, sub_unit)):
        roles[a] = max(roles.get(a, 0), u)
    sub_axes = sorted(a for a, u in roles.items() if u < lane_unit)

    # ~4 MiB per block (generation-aware); in+out double-buffered => ~16 MiB of
    # VMEM, comfortably inside v5e/v6e (128 MiB) and v7x (64 MiB).
    try:
        vmem_bytes = int(pltpu.get_tpu_info().vmem_capacity_bytes)
    except Exception:
        vmem_bytes = 64 * 1024 * 1024
    block_budget_bytes = min(4 * 1024 * 1024, max(512 * 1024, vmem_bytes // 16))
    budget_elems = max(lane_unit * sub_unit, block_budget_bytes // itemsize)

    tiles = [1] * cn

    if lane_out == lane_in:
        # ---- copy-style permute: the lane dim is preserved -------------------
        # Lane tile as wide as possible; minimal input sublane tile; remaining
        # budget goes to the OUTPUT second-to-last axis (long HBM write runs).
        min_sub = math.prod(min(c_shape[a], sub_unit) for a in sub_axes)
        lane_cap = _floor_to(budget_elems // max(1, min_sub), lane_unit)
        tiles[lane_in] = _pick_tile(c_shape[lane_in], lane_unit, lane_cap)
        rem = max(1, budget_elems // tiles[lane_in])
        if sub_out != sub_in:
            tiles[sub_in] = _pick_tile(c_shape[sub_in], sub_unit, sub_unit)
            rem = max(1, rem // tiles[sub_in])
            tiles[sub_out] = _pick_tile(c_shape[sub_out], sub_unit,
                                        _floor_to(rem, sub_unit))
        else:
            tiles[sub_in] = _pick_tile(c_shape[sub_in], sub_unit,
                                       _floor_to(rem, sub_unit))
    else:
        # ---- relayout permute: the lane dim moves ----------------------------
        # Minimal legal tiles on pure-sublane axes, then split the budget over
        # the two lane axes, biased (~2x) toward a wide OUTPUT lane tile.
        for a in sub_axes:
            tiles[a] = _pick_tile(c_shape[a], sub_unit, sub_unit)
        sub_prod = math.prod(tiles[a] for a in sub_axes) if sub_axes else 1
        rem = max(lane_unit * lane_unit, budget_elems // sub_prod)
        out_cap = _floor_to(int(math.sqrt(2.0 * rem)), lane_unit)
        tiles[lane_out] = _pick_tile(c_shape[lane_out], lane_unit, out_cap)
        in_cap = _floor_to(rem // tiles[lane_out], lane_unit)
        tiles[lane_in] = _pick_tile(c_shape[lane_in], lane_unit, in_cap)
        if tiles[lane_in] < in_cap:
            # Input lane axis could not use its share: feed leftover budget
            # back into the output lane tile (fills the budget exactly).
            out_cap2 = _floor_to(rem // tiles[lane_in], lane_unit)
            if out_cap2 > tiles[lane_out]:
                tiles[lane_out] = _pick_tile(c_shape[lane_out], lane_unit, out_cap2)

    in_block = tuple(tiles[a] for a in range(cn))
    out_block = tuple(tiles[c_perm[k]] for k in range(cn))

    # Grid in output order: consecutive steps write consecutive output blocks.
    # All axes are truly independent -> "parallel" (lets v7x megacore shard;
    # neutral on v5e/v6e).
    grid_axes = list(c_perm)
    grid = tuple(pl.cdiv(c_shape[a], tiles[a]) for a in grid_axes)
    axis_to_pos = {a: i for i, a in enumerate(grid_axes)}
    in_pos = tuple(axis_to_pos[a] for a in range(cn))

    def in_index_map(*gids):
        return tuple(gids[p] for p in in_pos)

    def out_index_map(*gids):
        return tuple(gids)             # grid is already in output order

    # In-kernel view: only the tiled ("active") axes are > 1.
    tiled_axes = [a for a in range(cn) if tiles[a] > 1]
    tiled_set = set(tiled_axes)
    act_out = [a for a in c_perm if a in tiled_set]
    reduced_perm = tuple(tiled_axes.index(a) for a in act_out)
    in_active_shape = tuple(tiles[a] for a in tiled_axes)

    # VMEM limit from actual footprint: 2x double-buffered (in + out) blocks
    # plus transpose temporaries and Mosaic internal scratch margin.
    block_bytes = math.prod(tiles) * itemsize
    vmem_limit = int(min(64 * 1024 * 1024,
                         max(16 * 1024 * 1024, 8 * block_bytes + (8 << 20))))

    def _call(use_einshape):
        kernel = functools.partial(
            _permute_kernel,
            in_active_shape=in_active_shape,
            reduced_perm=reduced_perm,
            use_einshape=use_einshape,
        )
        kwargs = dict(
            out_shape=jax.ShapeDtypeStruct(c_out_shape, x.dtype),
            grid=grid,
            in_specs=[pl.BlockSpec(in_block, in_index_map)],
            out_specs=pl.BlockSpec(out_block, out_index_map),
        )
        if interpret:
            kwargs["interpret"] = True
        else:
            kwargs["compiler_params"] = pltpu.CompilerParams(
                dimension_semantics=("parallel",) * len(grid),
                vmem_limit_bytes=vmem_limit,
            )
            kwargs["cost_estimate"] = pl.CostEstimate(
                flops=0, transcendentals=0,
                bytes_accessed=int(2 * x.size * itemsize))
        return pl.pallas_call(kernel, **kwargs)(xc)

    want_einshape = (
        not interpret
        and len(in_active_shape) > 1
        and reduced_perm != tuple(range(len(reduced_perm)))
        and _einshape_ok()
    )
    if want_einshape:
        try:
            yc = _call(True)
        except Exception:
            yc = _call(False)           # fall back to jnp.transpose lowering
    else:
        yc = _call(False)
    return yc.reshape(out_shape)


# ------------------------------ tests ---------------------------------------


if __name__ == "__main__":
    key = jax.random.PRNGKey(0)
    ks = jax.random.split(key, 8)

    def check(x, frm, to, interpret=False):
        y = jax.block_until_ready(pallas_permute(x, frm, to, interpret=interpret))
        ref = jnp.transpose(x, tuple(frm.index(d) for d in to))
        assert y.shape == ref.shape and y.dtype == ref.dtype
        assert jnp.array_equal(y, ref), (frm, to, tuple(x.shape), str(x.dtype))

    # 3D: Permute('NTC', 'NCT') == x.permute(0, 2, 1)
    check(jax.random.normal(ks[0], (2, 8, 32), dtype=jnp.float32), "NTC", "NCT")
    # 4D relayout: NCHW -> NHWC (H,W coalesce; asymmetric lane split path)
    check(jax.random.normal(ks[1], (2, 4, 16, 16), dtype=jnp.float32), "NCHW", "NHWC")
    # 4D copy-style: lane dim preserved; output-sublane-priority path
    check(jax.random.normal(ks[2], (2, 4, 16, 16), dtype=jnp.float32), "NCHW", "NHCW")
    # 5D: NCDHW -> NDHWC (D,H,W coalesce)
    check(jax.random.normal(ks[3], (2, 4, 3, 8, 8), dtype=jnp.float32), "NCDHW", "NDHWC")
    # 6D path (coalesces down to a 3D transpose)
    check(jax.random.normal(ks[4], (2, 3, 4, 8, 8, 4), dtype=jnp.float32),
          "ABCDEF", "ADEFBC")
    # bf16: dtype-aware sublane unit
    check(jax.random.normal(ks[5], (2, 4, 16, 16)).astype(jnp.bfloat16), "NCHW", "NHWC")
    # Ragged, non-power-of-two dims: exercises the fixed _pick_tile (cap-sized
    # ragged tiles + masked edge blocks) on real hardware.
    check(jax.random.normal(ks[6], (2, 2000, 900), dtype=jnp.float32), "NTC", "NCT")
    # Small-channel int8 (sub_unit=32) sanity check in interpreter mode.
    check(jax.random.randint(ks[7], (2, 4, 16, 16), -100, 100).astype(jnp.int8),
          "NCHW", "NHWC", interpret=True)

    print("KERNEL_OK")
</pallas_src>

<mosaic_0001>
module attributes {stable_mosaic.version = 11 : i64} {
  func.func @k2(%arg0: memref<64x128xf32, #tpu.memory_space<vmem>>, %arg1: memref<128x64xf32, #tpu.memory_space<vmem>>) attributes {dimension_semantics = [], scalar_prefetch = 0 : i64, scratch_operands = 0 : i64, tpu.core_type = #tpu.core_type<tc>} {
    %c0 = arith.constant 0 : index
    %c0_0 = arith.constant 0 : index
    %0 = vector.load %arg0[%c0, %c0_0] : memref<64x128xf32, #tpu.memory_space<vmem>>, vector<64x128xf32>
    %1 = tpu.transpose %0, [1, 0] : vector<64x128xf32> -> vector<128x64xf32>
    %c0_1 = arith.constant 0 : index
    %c0_2 = arith.constant 0 : index
    %2 = vector.load %arg1[%c0_1, %c0_2] : memref<128x64xf32, #tpu.memory_space<vmem>>, vector<128x64xf32>
    tpu.vector_store %arg1[%c0_1, %c0_2], %1 {strides = array<i32>} : memref<128x64xf32, #tpu.memory_space<vmem>>, vector<128x64xf32>,
    return
  }
}

module attributes {stable_mosaic.version = 11 : i64} {
  func.func @_permute_kernel(%arg0: i32, %arg1: i32, %arg2: i32, %arg3: memref<1x8x32xf32, #tpu.memory_space<vmem>>, %arg4: memref<1x32x8xf32, #tpu.memory_space<vmem>>) attributes {dimension_semantics = [#tpu.dimension_semantics<parallel>, #tpu.dimension_semantics<parallel>, #tpu.dimension_semantics<parallel>], iteration_bounds = array<i64: 2, 1, 1>, scalar_prefetch = 0 : i64, scratch_operands = 0 : i64, tpu.core_type = #tpu.core_type<tc>, window_params = [{transform_indices = @transform_0, window_bounds = array<i64: 1, 8, 32>}, {transform_indices = @transform_1, window_bounds = array<i64: 1, 32, 8>}]} {
    %c0 = arith.constant 0 : index
    %c0_0 = arith.constant 0 : index
    %c0_1 = arith.constant 0 : index
    %0 = vector.load %arg3[%c0, %c0_0, %c0_1] : memref<1x8x32xf32, #tpu.memory_space<vmem>>, vector<1x8x32xf32>
    %1 = vector.shape_cast %0 : vector<1x8x32xf32> to vector<8x32xf32>
    %2 = tpu.transpose %1, [1, 0] : vector<8x32xf32> -> vector<32x8xf32>
    %3 = vector.shape_cast %2 : vector<32x8xf32> to vector<1x32x8xf32>
    %c0_2 = arith.constant 0 : index
    %c0_3 = arith.constant 0 : index
    %c0_4 = arith.constant 0 : index
    %4 = vector.load %arg4[%c0_2, %c0_3, %c0_4] : memref<1x32x8xf32, #tpu.memory_space<vmem>>, vector<1x32x8xf32>
    tpu.vector_store %arg4[%c0_2, %c0_3, %c0_4], %3 {strides = array<i32>} : memref<1x32x8xf32, #tpu.memory_space<vmem>>, vector<1x32x8xf32>,
    return
  }
  func.func @transform_0(%arg0: i32, %arg1: i32, %arg2: i32) -> (i32, i32, i32) {
    %c0_i32 = arith.constant 0 : i32
    return %arg0, %arg2, %arg1 : i32, i32, i32
  }
  func.func @transform_1(%arg0: i32, %arg1: i32, %arg2: i32) -> (i32, i32, i32) {
    %c0_i32 = arith.constant 0 : i32
    return %arg0, %arg1, %arg2 : i32, i32, i32
  }
}

</mosaic_0001>

<llo_original>
// kernel: tpu_custom_call.1
$region0: #{tpu_custom_call.1}
  #allocation0 [shape = 'u32[]', space=smem, size = 0x4, offset = 0x4, fixed_abs, tag = 'smem constant byte address 0x4 - core index']
  #allocation1 [shape = 'u32[72,128]{1,0:T(1,128)}', space=vmem, size = 0x9000, scoped, tag = 'internal scratch']
  %s0 = inlined_call_operand.hbm [shape: f32[64,128], index: 0, kind: input, shape index: {}]
  %s1 = inlined_call_operand.vmem [shape: f32[128,64], index: 1, kind: output, shape index: {}]
  %s2 = sld [smem:[#allocation0]]
  $region18: #{tpu_custom_call.1} parent=0
    _
  %s4 = ssub.s32 1, %s2
  %s5 = scalar_select 0, %s4, %s2
  $region1: #{tpu_custom_call.1} parent=0
    #allocation2 [shape = 'u8[32768]{0}', space=vmem, size = 0x8000, scoped, tag = 'input window, operand 0, single buffered']
    #allocation3 [shape = 's32[1]{0}', space=sflag, size = 0x4, scoped, tag = 'scoped memory for tpu_custom_call.1']
    %6 = vsyncpa [#allocation3], 0
    // Predicated region
    $region2: #{tpu_custom_call.1} parent=1 // pred_check
      _
    $region3: #{tpu_custom_call.1} parent=1 // pred_check_branch
      %8 = sbr.rel (0) target = $region5
    $region4: #{tpu_custom_call.1} parent=1 // pred_region
      %10 = vsyncadd [#allocation3], 0
      %s11 = sshll.u32 %s0, 4
      %s12 = int_to_ptr.hbm [resolvable:$true] %s11
      %s13 = sshll.u32 [#allocation2], 4
      %s14 = int_to_ptr.vmem [resolvable:$true] %s13
      %19 = dma.hbm_to_vmem [thread:$0]  %s12, 1024, %s14, [#allocation3], 128, 128, 8
    $region5: #{tpu_custom_call.1} parent=1 // pred_fallthru
      _
    // Predicated region
    $region6: #{tpu_custom_call.1} parent=1 // pred_check
      _
    $region7: #{tpu_custom_call.1} parent=1 // pred_check_branch
      %21 = sbr.rel (0) target = $region9
    $region8: #{tpu_custom_call.1} parent=1 // pred_region
      %23 = dma.done [#allocation3], 1024
    $region9: #{tpu_custom_call.1} parent=1 // pred_fallthru
      _
    %v24 = vld [vmem:[#allocation2] sm:$0xff]
    %v25 = vld [vmem:[#allocation2 + $0x8] sm:$0xff]
    %v26 = vld [vmem:[#allocation2 + $0x10] sm:$0xff]
    %v27 = vld [vmem:[#allocation2 + $0x18] sm:$0xff]
    %v28 = vld [vmem:[#allocation2 + $0x20] sm:$0xff]
    %v29 = vld [vmem:[#allocation2 + $0x28] sm:$0xff]
    %v30 = vld [vmem:[#allocation2 + $0x30] sm:$0xff]
    %v31 = vld [vmem:[#allocation2 + $0x38] sm:$0xff]
    %32 = vxpose.xlu0.b32.start [1/16] %v24, 128
    %33 = vxpose.xlu0.b32.cont [2/16] %v25, 128
    %34 = vxpose.xlu0.b32.cont [3/16] %v26, 128
    %35 = vxpose.xlu0.b32.cont [4/16] %v27, 128
    %36 = vxpose.xlu0.b32.cont [5/16] %v28, 128
    %37 = vxpose.xlu0.b32.cont [6/16] %v29, 128
    %38 = vxpose.xlu0.b32.cont [7/16] %v30, 128
    %39 = vxpose.xlu0.b32.cont [8/16] %v31, 128
    %40 = vxpose.xlu0.b32.cont [9/16] 0.0, 128
    %41 = vxpose.xlu0.b32.cont [10/16] 0.0, 128
    %42 = vxpose.xlu0.b32.cont [11/16] 0.0, 128
    %43 = vxpose.xlu0.b32.cont [12/16] 0.0, 128
    %44 = vxpose.xlu0.b32.cont [13/16] 0.0, 128
    %45 = vxpose.xlu0.b32.cont [14/16] 0.0, 128
    %46 = vxpose.xlu0.b32.cont [15/16] 0.0, 128
    %47 = vxpose.xlu0.b32.end [16/16] 0.0, 128
    %v48 = vpop.trf.xlu0
    %v49 = vpop.trf.xlu0
    %v50 = vpop.trf.xlu0
    %v51 = vpop.trf.xlu0
    %v52 = vpop.trf.xlu0
    %v53 = vpop.trf.xlu0
    %v54 = vpop.trf.xlu0
    %v55 = vpop.trf.xlu0
    %v56 = vpop.trf.xlu0
    %v57 = vpop.trf.xlu0
    %v58 = vpop.trf.xlu0
    %v59 = vpop.trf.xlu0
    %v60 = vpop.trf.xlu0
    %v61 = vpop.trf.xlu0
    %v62 = vpop.trf.xlu0
    %v63 = vpop.trf.xlu0
    %vm64 = vcmask 523264
    %65 = vst.msk [vmem:[%s1] sm:$0xff] %vm64, %v48
    %66 = vst.msk [vmem:[%s1 + $0x8] sm:$0xff] %vm64, %v49
    %67 = vst.msk [vmem:[%s1 + $0x10] sm:$0xff] %vm64, %v50
    %68 = vst.msk [vmem:[%s1 + $0x18] sm:$0xff] %vm64, %v51
    %69 = vst.msk [vmem:[%s1 + $0x20] sm:$0xff] %vm64, %v52
    %70 = vst.msk [vmem:[%s1 + $0x28] sm:$0xff] %vm64, %v53
    %71 = vst.msk [vmem:[%s1 + $0x30] sm:$0xff] %vm64, %v54
    %72 = vst.msk [vmem:[%s1 + $0x38] sm:$0xff] %vm64, %v55
    %73 = vst.msk [vmem:[%s1 + $0x40] sm:$0xff] %vm64, %v56
    %74 = vst.msk [vmem:[%s1 + $0x48] sm:$0xff] %vm64, %v57
    %75 = vst.msk [vmem:[%s1 + $0x50] sm:$0xff] %vm64, %v58
    %76 = vst.msk [vmem:[%s1 + $0x58] sm:$0xff] %vm64, %v59
    %77 = vst.msk [vmem:[%s1 + $0x60] sm:$0xff] %vm64, %v60
    %78 = vst.msk [vmem:[%s1 + $0x68] sm:$0xff] %vm64, %v61
    %79 = vst.msk [vmem:[%s1 + $0x70] sm:$0xff] %vm64, %v62
    %80 = vst.msk [vmem:[%s1 + $0x78] sm:$0xff] %vm64, %v63
    // Predicated region
    $region10: #{tpu_custom_call.1} parent=1 // pred_check
      _
    $region11: #{tpu_custom_call.1} parent=1 // pred_check_branch
      %82 = sbr.rel (0) target = $region13
    $region12: #{tpu_custom_call.1} parent=1 // pred_region
      _
    $region13: #{tpu_custom_call.1} parent=1 // pred_fallthru
      _
    // Predicated region
    $region14: #{tpu_custom_call.1} parent=1 // pred_check
      _
    $region15: #{tpu_custom_call.1} parent=1 // pred_check_branch
      %84 = sbr.rel (0) target = $region17
    $region16: #{tpu_custom_call.1} parent=1 // pred_region
      _
    $region17: #{tpu_custom_call.1} parent=1 // pred_fallthru
      _
    %85 = vsyncpa [#allocation3], 1

// kernel: tpu_custom_call.1
$region0: #{tpu_custom_call.1}
  #allocation0 [shape = 'u32[]', space=smem, size = 0x4, offset = 0x4, fixed_abs, tag = 'smem constant byte address 0x4 - core index']
  #allocation1 [shape = 'u32[72,128]{1,0:T(1,128)}', space=vmem, size = 0x9000, scoped, tag = 'internal scratch']
  %s0 = inlined_call_operand.hbm [shape: f32[2,8,32], index: 0, kind: input, shape index: {}]
  %s1 = inlined_call_operand.vmem [shape: f32[2,32,8], index: 1, kind: output, shape index: {}]
  %s2 = sld [smem:[#allocation0]]
  $region41: #{tpu_custom_call.1} parent=0
    _
  %s4 = ssub.s32 1, %s2
  %s5 = scalar_select 0, %s4, %s2
  $region1: #{tpu_custom_call.1} parent=0
    #allocation2 [shape = 'u8[8192]{0}', space=vmem, size = 0x2000, scoped, tag = 'input window, operand 0']
    #allocation3 [shape = 's32[2]{0}', space=sflag, size = 0x8, scoped, tag = 'scoped memory for tpu_custom_call.1']
    %6 = vsyncpa [#allocation3], 0
    %s7 = scalar_lea.sflag [#allocation3], 1
    %8 = vsyncpa %s7, 0
    loop: start=0, step=1, limit=4
    $region2: #{tpu_custom_call.1} parent=1 // loop_pre_header
      _
    $region3: #{tpu_custom_call.1} parent=1 // loop_header
      %s10 = sphi 0, %s14
      %p11 = scmp.ge.s32.totalorder %s10, 4
      %s17 = sphi 0, %s36
      %s18 = sphi 0, %s32
      %s19 = sphi 0, %s28
      %s20 = sphi 0, %s17
      %s21 = sphi 0, %s18
      %s22 = sphi 0, %s19
      %s23 = sphi 0, %s20
      %s24 = sphi 0, %s21
      %s25 = sphi 0, %s22
      %s43 = sphi 0, %s45
      %s46 = sphi 0, %s43
      %s47 = sphi 0, %s46
      %s63 = sphi 0, %s47
      %s73 = sphi 0, %s75
      %s76 = sphi 0, %s73
      %s77 = sphi 0, %s76
      %s93 = sphi 0, %s77
    $region4: #{tpu_custom_call.1} parent=1 // loop_header_branch
      %13 = sbr.rel (%p11) target = $region8
    $region5: #{tpu_custom_call.1} parent=1 // loop_body
      %s15 = ssub.s32 %s10, 1
      %s16 = ssub.s32 %s10, 2
      %s26 = sadd.s32 1, %s19
      %p27 = scmp.ge.s32.totalorder %s26, 1
      %s28 = scalar_select %p27, 0, %s26
      %s29 = sadd.s32 1, %s18
      %s30 = scalar_select %p27, %s29, %s18
      %p31 = scmp.ge.s32.totalorder %s30, 1
      %s32 = scalar_select %p31, 0, %s30
      %s33 = sadd.s32 1, %s17
      %s34 = scalar_select %p31, %s33, %s17
      %p35 = scmp.ge.s32.totalorder %s34, 2
      %s36 = scalar_select %p35, 0, %s34
      %s37 = ssub.s32 %s17, %s36
      %s38 = ssub.s32 %s19, %s28
      %s39 = sor.u32 %s37, %s38
      %s40 = ssub.s32 %s18, %s32
      %s41 = sor.u32 %s39, %s40
      %p42 = scmp.eq.s32.totalorder %s41, 0
      %s44 = sadd.s32 %s43, 1
      %s45 = scalar_select %p42, %s43, %s44
      %p48 = pneg %p42
      %p49 = scmp.eq.s32.totalorder %s10, 1
      %p50 = por %p48, %p49
      %p51 = scmp.ne.s32.totalorder %s43, %s46
      %p52 = scmp.eq.s32.totalorder %s10, 0
      %p53 = por %p51, %p52
      %p54 = scmp.ne.s32.totalorder %s43, %s46
      %p55 = scmp.eq.s32.totalorder %s15, 1
      %p56 = por %p54, %p55
      %p57 = scmp.ne.s32.totalorder %s46, %s47
      %p58 = scmp.eq.s32.totalorder %s15, 0
      %p59 = por %p57, %p58
      %p60 = scmp.ne.s32.totalorder %s46, %s47
      %p61 = scmp.eq.s32.totalorder %s16, 1
      %p62 = por %p60, %p61
      %p64 = scmp.ne.s32.totalorder %s47, %s63
      %p65 = scmp.eq.s32.totalorder %s16, 0
      %p66 = por %p64, %p65
      %s67 = ssub.s32 %s17, %s36
      %s68 = ssub.s32 %s18, %s32
      %s69 = sor.u32 %s67, %s68
      %s70 = ssub.s32 %s19, %s28
      %s71 = sor.u32 %s69, %s70
      %p72 = scmp.eq.s32.totalorder %s71, 0
      %s74 = sadd.s32 %s73, 1
      %s75 = scalar_select %p72, %s73, %s74
      %p78 = pneg %p72
      %p79 = scmp.eq.s32.totalorder %s10, 1
      %p80 = por %p78, %p79
      %p81 = scmp.ne.s32.totalorder %s73, %s76
      %p82 = scmp.eq.s32.totalorder %s10, 0
      %p83 = por %p81, %p82
      %p84 = scmp.ne.s32.totalorder %s73, %s76
      %p85 = scmp.eq.s32.totalorder %s15, 1
      %p86 = por %p84, %p85
      %p87 = scmp.ne.s32.totalorder %s76, %s77
      %p88 = scmp.eq.s32.totalorder %s15, 0
      %p89 = por %p87, %p88
      %p90 = scmp.ne.s32.totalorder %s76, %s77
      %p91 = scmp.eq.s32.totalorder %s16, 1
      %p92 = por %p90, %p91
      %p94 = scmp.ne.s32.totalorder %s77, %s93
      %p95 = scmp.eq.s32.totalorder %s16, 0
      %p96 = por %p94, %p95
      %p97 = scmp.le.s32.totalorder 1, %s10
      %p98 = scmp.lt.s32.totalorder %s10, 3
      %p99 = pnand %p97, %p98
      %p100 = pneg %p99
      // Predicated region
      $region9: #{tpu_custom_call.1} parent=5 // pred_check
        _
      $region10: #{tpu_custom_call.1} parent=5 // pred_check_branch
        %102 = sbr.rel (%p99) target = $region12
      $region11: #{tpu_custom_call.1} parent=5 // pred_region
        %s103 = ssub.s32 %s10, 1
      $region12: #{tpu_custom_call.1} parent=5 // pred_fallthru
        _
      %p104 = scmp.lt.s32.totalorder %s10, 2
      // Predicated region
      $region13: #{tpu_custom_call.1} parent=5 // pred_check
        %p105 = pneg %p104
      $region14: #{tpu_custom_call.1} parent=5 // pred_check_branch
        %107 = sbr.rel (%p105) target = $region16
      $region15: #{tpu_custom_call.1} parent=5 // pred_region
        // Predicated region
        $region17: #{tpu_custom_call.1} parent=15 // pred_check
          %p108 = pneg %p53
        $region18: #{tpu_custom_call.1} parent=15 // pred_check_branch
          %110 = sbr.rel (%p108) target = $region20
        $region19: #{tpu_custom_call.1} parent=15 // pred_region
          %s111 = sand.u32 %s43, 1
          %s112 = scalar_lea.sflag [#allocation3], %s111
          %s113 = sand.u32 %s43, 1
          %s114 = smul.addr %s113, 8
          %s115 = scalar_lea.vmem [#allocation2], %s114
          %117 = vsyncadd %s112, 0
          %s118 = sadd.s32 %s18, %s19
          %s119 = sadd.s32 %s118, %s17
          %s120 = smul.addr %s119, 8
          %s121 = scalar_lea.hbm %s0, %s120
          %s123 = sshll.u32 %s121, 4
          %s124 = int_to_ptr.hbm [resolvable:$true] %s123
          %s125 = sshll.u32 %s115, 4
          %s126 = int_to_ptr.vmem [resolvable:$true] %s125
          %128 = dma.hbm_to_vmem [thread:$0]  %s124, 128, %s126, %s112
        $region20: #{tpu_custom_call.1} parent=15 // pred_fallthru
          _
      $region16: #{tpu_custom_call.1} parent=5 // pred_fallthru
        _
      %p129 = scmp.le.s32.totalorder 1, %s10
      %p130 = scmp.lt.s32.totalorder %s10, 3
      %p131 = pnand %p129, %p130
      %p132 = pneg %p131
      // Predicated region
      $region21: #{tpu_custom_call.1} parent=5 // pred_check
        _
      $region22: #{tpu_custom_call.1} parent=5 // pred_check_branch
        %134 = sbr.rel (%p131) target = $region24
      $region23: #{tpu_custom_call.1} parent=5 // pred_region
        %s135 = ssub.s32 %s10, 1
        %s136 = sand.u32 %s46, 1
        %s137 = scalar_lea.sflag [#allocation3], %s136
        %s138 = sand.u32 %s46, 1
        %s139 = smul.addr %s138, 8
        %s140 = scalar_lea.vmem [#allocation2], %s139
        // Predicated region
        $region25: #{tpu_custom_call.1} parent=23 // pred_check
          %p141 = pneg %p59
        $region26: #{tpu_custom_call.1} parent=23 // pred_check_branch
          %143 = sbr.rel (%p141) target = $region28
        $region27: #{tpu_custom_call.1} parent=23 // pred_region
          %145 = dma.done %s137, 128
        $region28: #{tpu_custom_call.1} parent=23 // pred_fallthru
          _
        %s146 = sand.u32 %s46, 1
        %s147 = scalar_lea.sflag [#allocation3], %s146
        %s148 = sand.u32 %s46, 1
        %s149 = smul.addr %s148, 8
        %s150 = scalar_lea.vmem [#allocation2], %s149
        %p151 = pneg %p59
        %p152 = pneg %p56
        %p153 = pneg %p89
        %p154 = pneg %p86
        %s155 = smul.u32 4, %s21
        %p156 = scmp.lt.s32.totalorder %s20, 1
        %s157 = scalar_select %p156, %s20, 1
        %p158 = scmp.lt.s32.totalorder %s155, 3
        %s159 = scalar_select %p158, %s155, 3
        %p160 = scmp.lt.s32.totalorder %s22, 0
        %s161 = scalar_select %p160, %s22, 0
        %s162 = sadd.s32 %s161, %s159
        %s163 = smul.addr %s157, 4
        %s164 = sadd.s32 %s162, %s163
        %s165 = smul.addr %s164, 8
        %s166 = scalar_lea.vmem %s1, %s165
        %s167 = smul.u32 4, %s21
        %p168 = scmp.lt.s32.totalorder %s20, 1
        %s169 = scalar_select %p168, %s20, 1
        %p170 = scmp.lt.s32.totalorder %s167, 3
        %s171 = scalar_select %p170, %s167, 3
        %p172 = scmp.lt.s32.totalorder %s22, 0
        %s173 = scalar_select %p172, %s22, 0
        %s174 = sadd.s32 %s173, %s171
        %s175 = smul.addr %s169, 4
        %s176 = sadd.s32 %s174, %s175
        %s177 = smul.addr %s176, 8
        %s178 = scalar_lea.vmem %s1, %s177
        %s179 = smul.u32 4, %s21
        %v180 = vld [vmem:[%s140] sm:$0xff]
        %181 = vxpose.xlu0.b32.start [1/16] %v180, 128
        %182 = vxpose.xlu0.b32.cont [2/16] 0.0, 128
        %183 = vxpose.xlu0.b32.cont [3/16] 0.0, 128
        %184 = vxpose.xlu0.b32.cont [4/16] 0.0, 128
        %185 = vxpose.xlu0.b32.cont [5/16] 0.0, 128
        %186 = vxpose.xlu0.b32.cont [6/16] 0.0, 128
        %187 = vxpose.xlu0.b32.cont [7/16] 0.0, 128
        %188 = vxpose.xlu0.b32.cont [8/16] 0.0, 128
        %189 = vxpose.xlu0.b32.cont [9/16] 0.0, 128
        %190 = vxpose.xlu0.b32.cont [10/16] 0.0, 128
        %191 = vxpose.xlu0.b32.cont [11/16] 0.0, 128
        %192 = vxpose.xlu0.b32.cont [12/16] 0.0, 128
        %193 = vxpose.xlu0.b32.cont [13/16] 0.0, 128
        %194 = vxpose.xlu0.b32.cont [14/16] 0.0, 128
        %195 = vxpose.xlu0.b32.cont [15/16] 0.0, 128
        %196 = vxpose.xlu0.b32.end [16/16] 0.0, 128
        %v197 = vpop.trf.xlu0
        %v198 = vpop.trf.xlu0
        %v199 = vpop.trf.xlu0
        %v200 = vpop.trf.xlu0
        %v201 = vpop.trf.xlu0
        %v202 = vpop.trf.xlu0
        %v203 = vpop.trf.xlu0
        %v204 = vpop.trf.xlu0
        %v205 = vpop.trf.xlu0
        %v206 = vpop.trf.xlu0
        %v207 = vpop.trf.xlu0
        %v208 = vpop.trf.xlu0
        %v209 = vpop.trf.xlu0
        %v210 = vpop.trf.xlu0
        %v211 = vpop.trf.xlu0
        %v212 = vpop.trf.xlu0
        %vm213 = vcmask 64512
        %214 = vst.msk [vmem:[%s178] sm:$0xff] %vm213, %v197
        %215 = vst.msk [vmem:[%s178 + $0x8] sm:$0xff] %vm213, %v198
        %216 = vst.msk [vmem:[%s178 + $0x10] sm:$0xff] %vm213, %v199
        %217 = vst.msk [vmem:[%s178 + $0x18] sm:$0xff] %vm213, %v200
        %s218 = smul.u32 4, %s21
        %p219 = scmp.lt.s32.totalorder %s20, 1
        %s220 = scalar_select %p219, %s20, 1
        %p221 = scmp.lt.s32.totalorder %s218, 3
        %s222 = scalar_select %p221, %s218, 3
        %p223 = scmp.lt.s32.totalorder %s22, 0
        %s224 = scalar_select %p223, %s22, 0
        %s225 = sadd.s32 %s224, %s222
        %s226 = smul.addr %s220, 4
        %s227 = sadd.s32 %s225, %s226
        %s228 = smul.addr %s227, 8
        %s229 = scalar_lea.vmem %s1, %s228
        // Predicated region
        $region29: #{tpu_custom_call.1} parent=23 // pred_check
          %p230 = pneg %p86
        $region30: #{tpu_custom_call.1} parent=23 // pred_check_branch
          %232 = sbr.rel (%p230) target = $region32
        $region31: #{tpu_custom_call.1} parent=23 // pred_region
          %s233 = smul.u32 4, %s21
        $region32: #{tpu_custom_call.1} parent=23 // pred_fallthru
          _
      $region24: #{tpu_custom_call.1} parent=5 // pred_fallthru
        _
      %p234 = scmp.le.s32.totalorder 2, %s10
      // Predicated region
      $region33: #{tpu_custom_call.1} parent=5 // pred_check
        %p235 = pneg %p234
      $region34: #{tpu_custom_call.1} parent=5 // pred_check_branch
        %237 = sbr.rel (%p235) target = $region36
      $region35: #{tpu_custom_call.1} parent=5 // pred_region
        %s238 = ssub.s32 %s10, 2
        // Predicated region
        $region37: #{tpu_custom_call.1} parent=35 // pred_check
          %p239 = pneg %p92
        $region38: #{tpu_custom_call.1} parent=35 // pred_check_branch
          %241 = sbr.rel (%p239) target = $region40
        $region39: #{tpu_custom_call.1} parent=35 // pred_region
          %s242 = smul.u32 4, %s24
          %p243 = scmp.lt.s32.totalorder %s23, 1
          %s244 = scalar_select %p243, %s23, 1
          %p245 = scmp.lt.s32.totalorder %s242, 3
          %s246 = scalar_select %p245, %s242, 3
          %p247 = scmp.lt.s32.totalorder %s25, 0
          %s248 = scalar_select %p247, %s25, 0
          %s249 = sadd.s32 %s248, %s246
          %s250 = smul.addr %s244, 4
          %s251 = sadd.s32 %s249, %s250
          %s252 = smul.addr %s251, 8
          %s253 = scalar_lea.vmem %s1, %s252
        $region40: #{tpu_custom_call.1} parent=35 // pred_fallthru
          _
      $region36: #{tpu_custom_call.1} parent=5 // pred_fallthru
        _
    $region6: #{tpu_custom_call.1} parent=1 // loop_footer
      %s14 = sadd.s32 1, %s10
    $region7: #{tpu_custom_call.1} parent=1 // loop_footer_branch
      %9 = sbr.rel target = $region3
    $region8: #{tpu_custom_call.1} parent=1 // loop_exit
      _
    %254 = vsyncpa [#allocation3], 1
    %s255 = scalar_lea.sflag [#allocation3], 1
    %256 = vsyncpa %s255, 1

</llo_original>
